<compile_context>
chip_gen: v7x
topology: tpu7x:2x2x1
jax: 0.10.0
libtpu: 0.0.40
codegen_flags: <defaults>
</compile_context>

<pallas_src>
import functools

import numpy as np
import jax
import jax.numpy as jnp
from jax.experimental import pallas as pl
from jax.experimental.pallas import tpu as pltpu

# ---------------------------------------------------------------------------
# A small synthetic darknet cfg (embedded string instead of a file on disk).
# ---------------------------------------------------------------------------
CFG = """
[net]
height=16
width=16
channels=3

[convolutional]
batch_normalize=1
filters=8
size=3
stride=1
pad=1
activation=leaky

[convolutional]
batch_normalize=1
filters=16
size=3
stride=2
pad=1
activation=leaky

[convolutional]
batch_normalize=1
filters=16
size=1
stride=1
pad=1
activation=leaky

[shortcut]
from=-2
activation=linear

[convolutional]
filters=18
size=1
stride=1
pad=1
activation=linear

[yolo]
mask=0,1,2
anchors=10,13, 16,30, 33,23, 30,61, 62,45, 59,119
classes=1
num=6

[route]
layers=-3

[upsample]
stride=2

[route]
layers=-1,-8

[convolutional]
batch_normalize=1
filters=8
size=3
stride=1
pad=1
activation=leaky

[convolutional]
filters=18
size=1
stride=1
pad=1
activation=linear

[yolo]
mask=3,4,5
anchors=10,13, 16,30, 33,23, 30,61, 62,45, 59,119
classes=1
num=6
"""


def parse_cfg_string(text):
    lines = [ln.strip() for ln in text.split("\n")]
    lines = [ln for ln in lines if len(ln) > 0 and ln[0] != "#"]
    block, blocks = {}, []
    for line in lines:
        if line[0] == "[":
            if len(block) != 0:
                blocks.append(block)
                block = {}
            block["type"] = line[1:-1].rstrip()
        else:
            key, value = line.split("=")
            block[key.rstrip()] = value.lstrip()
    blocks.append(block)
    return blocks


def _round_up(x, m):
    return ((x + m - 1) // m) * m


def _vmem_limit_bytes():
    """~Half of physical VMEM: 64 MiB on v5e/v6e (128 MiB), 32 MiB on v7x (64 MiB)."""
    try:
        cap = int(getattr(pltpu.get_tpu_info(), "vmem_capacity_bytes", 0))
    except Exception:
        cap = 0
    if cap <= 0:
        return 32 * 1024 * 1024
    return int(min(max(cap // 2, 32 * 1024 * 1024), 64 * 1024 * 1024))


_VMEM_LIMIT = _vmem_limit_bytes()


def _pick_m_tile(M, n_lane_blocks):
    """M tile (multiple of 16 for bf16 sublane packing) that keeps >=2 programs on
    the parallel grid axes when possible (v7x has 2 TensorCores)."""
    Mp = _round_up(M, 16)
    cands = (512, 256, 128, 64, 32, 16)
    for tm in cands:
        if Mp % tm == 0 and (Mp // tm) * n_lane_blocks >= 2:
            return tm, Mp
    for tm in cands:
        if Mp % tm == 0:
            return tm, Mp
    return Mp, Mp


def _pick_row_tile(R):
    """Row tile for the flat (rows, 128) elementwise kernels."""
    Rp = _round_up(R, 16)
    for tr in (1024, 512, 256, 128, 64, 32, 16):
        if Rp % tr == 0:
            return tr, Rp
    return Rp, Rp


# ---------------------------------------------------------------------------
# Pallas kernels
# ---------------------------------------------------------------------------
def _mm_bias_act_kernel(*refs, leaky, has_res):
    """Tiled matmul: bf16 MXU inputs, f32 accumulator scratch; bias + LeakyReLU
    (+ optional fused residual add) epilogue on the last K step."""
    if has_res:
        p_ref, w_ref, b_ref, r_ref, o_ref, acc_ref = refs
    else:
        p_ref, w_ref, b_ref, o_ref, acc_ref = refs
        r_ref = None
    k = pl.program_id(2)

    @pl.when(k == 0)
    def _():
        acc_ref[...] = jnp.zeros_like(acc_ref)

    acc_ref[...] += jnp.dot(p_ref[...], w_ref[...],
                            preferred_element_type=jnp.float32)

    @pl.when(k == pl.num_programs(2) - 1)
    def _():
        y = acc_ref[...] + b_ref[...]
        if leaky:
            y = jnp.where(y > 0, y, 0.1 * y)
        if r_ref is not None:
            y = y + r_ref[...]          # shortcut fused into the conv epilogue
        o_ref[...] = y


def _add_kernel(a_ref, b_ref, o_ref):
    o_ref[...] = a_ref[...] + b_ref[...]


def _upsample2x_kernel(x_ref, u_ref, v_ref, o_ref):
    """2x bilinear (align_corners=False) as two MXU matmuls per batch element:
    rows = U @ X (row interpolation, even/odd output rows already interleaved),
    out  = rows @ V (column interpolation at C granularity) -> final lane-dense
    (2H, 2W*C) layout, so no transpose epilogue is needed."""
    x = x_ref[0]                                                      # (H, W*C)
    rows = jnp.dot(u_ref[...], x, preferred_element_type=jnp.float32)  # (2H, W*C)
    o_ref[0] = jnp.dot(rows, v_ref[...], preferred_element_type=jnp.float32)


def _yolo_kernel(p_ref, ms_ref, me_ref, add_ref, o_ref):
    """YOLO predict_transform on a lane-dense (rows, 128) flattening.
    out = sigmoid(p)*ms + exp(p)*me + add, with a single EUP exp per element:
    e = exp(-p), sigmoid = 1/(1+e), exp(p) = 1/e."""
    p = p_ref[...]
    e = jnp.exp(-p)
    sig = pl.reciprocal(1.0 + e, approx=True)
    ex = pl.reciprocal(jnp.maximum(e, 1e-30), approx=True)   # clamp avoids inf*0
    o_ref[...] = (sig * ms_ref[...].astype(jnp.float32)
                  + ex * me_ref[...].astype(jnp.float32)
                  + add_ref[...].astype(jnp.float32))


# ---------------------------------------------------------------------------
# Pallas wrappers
# ---------------------------------------------------------------------------
def matmul_bias_act(patches, w, bias, leaky, residual=None):
    """Fused (im2col) matmul + bias (+LeakyReLU) (+residual).

    patches: (M, K) bf16; w: (K, Np) bf16 with BN scale folded, Np multiple of 128;
    bias: (1, Np) f32; residual: (M, Np) f32 or None.
    """
    M, K = patches.shape
    Np = w.shape[1]
    TN = 128
    TM, Mp = _pick_m_tile(M, Np // TN)
    # K (reduction) tiling: whole K when small, 512-wide tiles otherwise.
    TK = 512 if K > 1024 else _round_up(K, 16)
    Kp = _round_up(K, TK)

    if Kp != K:
        patches = jnp.pad(patches, ((0, 0), (0, Kp - K)))
        w = jnp.pad(w, ((0, Kp - K), (0, 0)))
    if Mp != M:
        patches = jnp.pad(patches, ((0, Mp - M), (0, 0)))
        if residual is not None:
            residual = jnp.pad(residual, ((0, Mp - M), (0, 0)))

    grid = (Mp // TM, Np // TN, Kp // TK)
    in_specs = [
        pl.BlockSpec((TM, TK), lambda i, j, kk: (i, kk)),   # streamed patch tiles
        pl.BlockSpec((TK, TN), lambda i, j, kk: (kk, j)),   # weight tiles
        pl.BlockSpec((1, TN), lambda i, j, kk: (0, j)),     # bias
    ]
    args = [patches, w, bias]
    if residual is not None:
        in_specs.append(pl.BlockSpec((TM, TN), lambda i, j, kk: (i, j)))
        args.append(residual)

    res_bytes = Mp * Np * 4 if residual is not None else 0
    out = pl.pallas_call(
        functools.partial(_mm_bias_act_kernel, leaky=leaky,
                          has_res=residual is not None),
        out_shape=jax.ShapeDtypeStruct((Mp, Np), jnp.float32),
        grid=grid,
        in_specs=in_specs,
        out_specs=pl.BlockSpec((TM, TN), lambda i, j, kk: (i, j)),
        scratch_shapes=[pltpu.VMEM((TM, TN), jnp.float32)],
        compiler_params=pltpu.CompilerParams(
            dimension_semantics=("parallel", "parallel", "arbitrary"),
            vmem_limit_bytes=_VMEM_LIMIT),
        cost_estimate=pl.CostEstimate(
            flops=2 * Mp * Kp * Np,
            transcendentals=0,
            bytes_accessed=2 * (Mp * Kp + Kp * Np) + 4 * (Np + Mp * Np) + res_bytes),
    )(*args)
    return out[:M] if Mp != M else out


def conv2d_pallas(x_nhwc, p, residual=None):
    """Conv (+BN folded, +LeakyReLU, + optional fused shortcut add) via bf16 im2col +
    tiled fused Pallas matmul."""
    B, H, W, C = x_nhwc.shape
    k, s, pad = p["k"], p["stride"], p["pad"]
    Ho = (H + 2 * pad - k) // s + 1
    Wo = (W + 2 * pad - k) // s + 1
    xp = jnp.pad(x_nhwc, ((0, 0), (pad, pad), (pad, pad), (0, 0))).astype(jnp.bfloat16)
    cols = []
    for di in range(k):
        for dj in range(k):
            cols.append(xp[:, di:di + s * Ho:s, dj:dj + s * Wo:s, :])
    patches = jnp.stack(cols, axis=3).reshape(B * Ho * Wo, k * k * C)

    res2d = None
    if residual is not None:
        Np = p["w"].shape[1]
        res2d = residual.reshape(B * Ho * Wo, residual.shape[-1]).astype(jnp.float32)
        res2d = jnp.pad(res2d, ((0, 0), (0, Np - res2d.shape[1])))

    out = matmul_bias_act(patches, p["w"], p["bias"], p["leaky"], res2d)
    # crop padded output channels back to the true filter count
    return out.reshape(B, Ho, Wo, -1)[..., :p["filters"]]


def add_pallas(a, b):
    """Shortcut add (only used when it cannot be fused into a conv epilogue)."""
    shape = a.shape
    total = int(np.prod(shape))
    if total % 128 == 0:
        L = 128
        R = total // L
        TR, Rp = _pick_row_tile(R)
        a2 = a.reshape(R, L)
        b2 = b.reshape(R, L)
        if Rp != R:
            a2 = jnp.pad(a2, ((0, Rp - R), (0, 0)))
            b2 = jnp.pad(b2, ((0, Rp - R), (0, 0)))
        spec = pl.BlockSpec((TR, L), lambda i: (i, 0))
        out = pl.pallas_call(
            _add_kernel,
            out_shape=jax.ShapeDtypeStruct((Rp, L), jnp.float32),
            grid=(Rp // TR,),
            in_specs=[spec, spec],
            out_specs=spec,
            compiler_params=pltpu.CompilerParams(
                dimension_semantics=("parallel",)),
        )(a2, b2)
        out = out[:R] if Rp != R else out
        return out.reshape(shape)
    # fallback: single whole-array block (shapes here are tiny)
    L = shape[-1]
    R = total // L
    out = pl.pallas_call(
        _add_kernel,
        out_shape=jax.ShapeDtypeStruct((R, L), jnp.float32),
        grid=(1,),
        in_specs=[pl.BlockSpec((R, L), lambda i: (0, 0))] * 2,
        out_specs=pl.BlockSpec((R, L), lambda i: (0, 0)),
    )(a.reshape(R, L), b.reshape(R, L))
    return out.reshape(shape)


def _interp_matrix_2x(n):
    """(2n, n) bilinear 2x upsample matrix, align_corners=False (PyTorch default)."""
    m = np.zeros((2 * n, n), np.float32)
    for o in range(2 * n):
        src = (o + 0.5) / 2.0 - 0.5
        i0 = int(np.floor(src))
        w1 = src - i0
        i0c = min(max(i0, 0), n - 1)
        i1c = min(max(i0 + 1, 0), n - 1)
        m[o, i0c] += 1.0 - w1
        m[o, i1c] += w1
    return m


def upsample2x_pallas(x_nhwc):
    """nn.Upsample(scale_factor=2, mode='bilinear') (align_corners=False)."""
    B, H, W, C = x_nhwc.shape
    WC = W * C
    u = _interp_matrix_2x(H)                                           # (2H, H)
    v = np.kron(_interp_matrix_2x(W).T, np.eye(C, dtype=np.float32))   # (WC, 2WC)
    # TODO(synk): V is (W*C, 2*W*C); fine for small maps, but for large W*C the
    #             column pass should become lane rolls instead of a dense matmul.
    x2 = x_nhwc.reshape(B, H, WC)
    out = pl.pallas_call(
        _upsample2x_kernel,
        out_shape=jax.ShapeDtypeStruct((B, 2 * H, 2 * WC), jnp.float32),
        grid=(B,),
        in_specs=[
            pl.BlockSpec((1, H, WC), lambda b: (b, 0, 0)),
            pl.BlockSpec((2 * H, H), lambda b: (0, 0)),
            pl.BlockSpec((WC, 2 * WC), lambda b: (0, 0)),
        ],
        out_specs=pl.BlockSpec((1, 2 * H, 2 * WC), lambda b: (b, 0, 0)),
        compiler_params=pltpu.CompilerParams(
            dimension_semantics=("parallel",)),
    )(x2, jnp.asarray(u), jnp.asarray(v))
    return out.reshape(B, 2 * H, 2 * W, C)


def predict_transform_pallas(x_nhwc, inp_dim, anchors, num_classes):
    B, G, _, _ = x_nhwc.shape
    A = len(anchors)
    attrs = 5 + num_classes
    stride = inp_dim // G
    N = G * G * A
    total = B * N * attrs
    assert total % 128 == 0, "lane-dense flattening requires total % 128 == 0"
    L = 128
    R = total // L
    TR, Rp = _pick_row_tile(R)

    # Static per-attribute tables folded so that
    #   out = sigmoid(p)*mul_sig + exp(p)*mul_exp + add
    # reproduces the canonical predict_transform.  All values (stride, grid offsets
    # * stride, anchor sizes in pixels) are small integers -> exact in bf16.
    gx, gy = np.meshgrid(np.arange(G), np.arange(G))
    mul_sig = np.ones((N, attrs), np.float32)
    mul_exp = np.zeros((N, attrs), np.float32)
    add = np.zeros((N, attrs), np.float32)
    mul_sig[:, 0:2] = float(stride)
    mul_sig[:, 2:4] = 0.0
    add[:, 0] = np.repeat(gx.reshape(-1), A) * stride
    add[:, 1] = np.repeat(gy.reshape(-1), A) * stride
    mul_exp[:, 2] = np.tile(np.array([a[0] for a in anchors], np.float32), G * G)
    mul_exp[:, 3] = np.tile(np.array([a[1] for a in anchors], np.float32), G * G)

    def prep(t):
        t = np.tile(t.reshape(1, -1), (B, 1)).reshape(R, L)
        if Rp != R:
            t = np.pad(t, ((0, Rp - R), (0, 0)))
        return jnp.asarray(t, dtype=jnp.bfloat16)

    pred = x_nhwc.reshape(R, L)
    if Rp != R:
        pred = jnp.pad(pred, ((0, Rp - R), (0, 0)))

    spec = pl.BlockSpec((TR, L), lambda i: (i, 0))
    out = pl.pallas_call(
        _yolo_kernel,
        out_shape=jax.ShapeDtypeStruct((Rp, L), jnp.float32),
        grid=(Rp // TR,),
        in_specs=[spec, spec, spec, spec],
        out_specs=spec,
        compiler_params=pltpu.CompilerParams(
            dimension_semantics=("parallel",)),
    )(pred, prep(mul_sig), prep(mul_exp), prep(add))
    out = out[:R] if Rp != R else out
    return out.reshape(B, N, attrs)


# ---------------------------------------------------------------------------
# Parameter construction (mirrors create_modules) — deterministic synthetic init
# ---------------------------------------------------------------------------
def create_params(blocks, key):
    net_info = blocks[0]
    prev_filters = int(net_info.get("channels", 3))
    output_filters = []
    params = []
    for index, blk in enumerate(blocks[1:]):
        p = {}
        if blk["type"] == "convolutional":
            bn = int(blk.get("batch_normalize", 0))
            filters = int(blk["filters"])
            k = int(blk["size"])
            stride = int(blk["stride"])
            pad = (k - 1) // 2 if int(blk["pad"]) else 0
            key, k1, k2, k3, k4, k5 = jax.random.split(key, 6)
            fan_in = prev_filters * k * k
            # PyTorch conv weight layout (O, I, kh, kw), folded to matmul layout.
            w = jax.random.normal(k1, (filters, prev_filters, k, k), jnp.float32) / np.sqrt(fan_in)
            if bn:
                gamma = 1.0 + 0.1 * jax.random.normal(k2, (filters,), jnp.float32)
                beta = 0.1 * jax.random.normal(k3, (filters,), jnp.float32)
                mean = 0.1 * jax.random.normal(k4, (filters,), jnp.float32)
                var = jnp.abs(1.0 + 0.1 * jax.random.normal(k5, (filters,), jnp.float32))
                scale = gamma / jnp.sqrt(var + 1e-5)
                bias = beta - mean * scale
            else:
                scale = jnp.ones((filters,), jnp.float32)
                bias = 0.1 * jax.random.normal(k2, (filters,), jnp.float32)
            w_mm = jnp.transpose(w, (2, 3, 1, 0)).reshape(k * k * prev_filters, filters)
            # Fold the BN/affine scale into the weight columns (epilogue is bias+leaky).
            w_mm = w_mm * scale[None, :]
            # Pad output channels to a multiple of 128 for lane-dense MXU stores,
            # store in bf16 (MXU-native on v5e/v6e/v7x); bias stays f32.
            n_pad = _round_up(filters, 128)
            w_mm = jnp.pad(w_mm, ((0, 0), (0, n_pad - filters))).astype(jnp.bfloat16)
            bias_p = jnp.pad(bias, (0, n_pad - filters)).reshape(1, n_pad)
            p = dict(w=w_mm, bias=bias_p, k=k, stride=stride, pad=pad,
                     leaky=(blk["activation"] == "leaky"), filters=filters)
            prev_filters = filters
        elif blk["type"] == "route":
            layers = [int(a) for a in blk["layers"].split(",")]
            start = layers[0]
            end = layers[1] if len(layers) > 1 else 0
            if start > 0:
                start -= index
            if end > 0:
                end -= index
            if end < 0:
                prev_filters = output_filters[index + start] + output_filters[index + end]
            else:
                prev_filters = output_filters[index + start]
        elif blk["type"] == "yolo":
            mask = [int(m) for m in blk["mask"].split(",")]
            anch = [int(a) for a in blk["anchors"].split(",")]
            anch = [(anch[i], anch[i + 1]) for i in range(0, len(anch), 2)]
            anch = [anch[m] for m in mask]
            p = dict(anchors=anch, classes=int(blk["classes"]))
        # shortcut / upsample: channel count unchanged
        params.append(p)
        output_filters.append(prev_filters)
    return net_info, params


# ---------------------------------------------------------------------------
# DarkNet forward (mirrors DarkNet.forward)
# ---------------------------------------------------------------------------
def _consumer_map(body):
    """producer layer index -> list of consumer layer indices (for fusion safety)."""
    cons = {}
    for j, blk in enumerate(body):
        t = blk["type"]
        srcs = []
        if t in ("convolutional", "upsample", "yolo"):
            srcs = [j - 1]
        elif t == "route":
            layers = [int(a) for a in blk["layers"].split(",")]
            srcs = [l if l > 0 else j + l for l in layers]
        elif t == "shortcut":
            srcs = [j - 1, j + int(blk["from"])]
        for s in srcs:
            if s >= 0:
                cons.setdefault(s, []).append(j)
    return cons


def darknet_forward(x_nchw, net_info, blocks, params):
    body = blocks[1:]
    consumers = _consumer_map(body)
    x = jnp.transpose(x_nchw.astype(jnp.float32), (0, 2, 3, 1))  # NCHW -> NHWC
    outputs = {}
    detections = None
    inp_dim = int(net_info["height"])
    fused_shortcuts = set()
    for i, blk in enumerate(body):
        t = blk["type"]
        if t == "convolutional":
            pcv = params[i]
            residual = None
            # Fuse the following shortcut's add into this conv's epilogue when the
            # raw conv output is not referenced anywhere else.
            if (i + 1 < len(body) and body[i + 1]["type"] == "shortcut"
                    and consumers.get(i, []) == [i + 1]):
                frm = int(body[i + 1]["from"])
                res = outputs.get(i + 1 + frm)
                Bc, Hc, Wc, _ = x.shape
                Ho = (Hc + 2 * pcv["pad"] - pcv["k"]) // pcv["stride"] + 1
                Wo = (Wc + 2 * pcv["pad"] - pcv["k"]) // pcv["stride"] + 1
                if res is not None and res.shape == (Bc, Ho, Wo, pcv["filters"]):
                    residual = res
                    fused_shortcuts.add(i + 1)
            x = conv2d_pallas(x, pcv, residual=residual)
        elif t == "upsample":
            x = upsample2x_pallas(x)
        elif t == "route":
            layers = [int(a) for a in blk["layers"].split(",")]
            if layers[0] > 0:
                layers[0] -= i
            if len(layers) == 1:
                x = outputs[i + layers[0]]
            else:
                if layers[1] > 0:
                    layers[1] -= i
                # torch.cat dim=1 (channels) == last axis in NHWC
                x = jnp.concatenate([outputs[i + layers[0]], outputs[i + layers[1]]], axis=-1)
        elif t == "shortcut":
            if i in fused_shortcuts:
                x = outputs[i - 1]          # residual already added in the conv epilogue
            else:
                x = add_pallas(outputs[i - 1], outputs[i + int(blk["from"])])
        elif t == "yolo":
            p = params[i]
            x = predict_transform_pallas(x, inp_dim, p["anchors"], p["classes"])
            detections = x if detections is None else jnp.concatenate([detections, x], axis=1)
        outputs[i] = x
    return detections


if __name__ == "__main__":
    key = jax.random.PRNGKey(0)
    kx, kp = jax.random.split(key)

    blocks = parse_cfg_string(CFG)
    net_info, params = create_params(blocks, kp)

    B = 2
    H = int(net_info["height"])
    W = int(net_info["width"])
    C = int(net_info["channels"])
    x = jax.random.normal(kx, (B, C, H, W), jnp.float32)  # NCHW like PyTorch

    det = darknet_forward(x, net_info, blocks, params)
    det = jax.block_until_ready(det)

    # two yolo heads: 8*8*3 + 16*16*3 = 960 boxes, 5 + 1 classes = 6 attrs
    assert det.shape == (B, 960, 6), det.shape
    assert bool(jnp.all(jnp.isfinite(det)))
    print("KERNEL_OK")
</pallas_src>

<mosaic_0001>
module attributes {stable_mosaic.version = 11 : i64} {
  func.func @_mm_bias_act_kernel(%arg0: i32, %arg1: i32, %arg2: i32, %arg3: memref<256x32xbf16, #tpu.memory_space<vmem>>, %arg4: memref<32x128xbf16, #tpu.memory_space<vmem>>, %arg5: memref<1x128xf32, #tpu.memory_space<vmem>>, %arg6: memref<256x128xf32, #tpu.memory_space<vmem>>, %arg7: memref<256x128xf32, #tpu.memory_space<vmem>>) attributes {dimension_semantics = [#tpu.dimension_semantics<parallel>, #tpu.dimension_semantics<parallel>, #tpu.dimension_semantics<arbitrary>], iteration_bounds = array<i64: 2, 1, 1>, scalar_prefetch = 0 : i64, scratch_operands = 1 : i64, tpu.core_type = #tpu.core_type<tc>, window_params = [{transform_indices = @transform_0, window_bounds = array<i64: 256, 32>}, {transform_indices = @transform_1, window_bounds = array<i64: 32, 128>}, {transform_indices = @transform_2, window_bounds = array<i64: 1, 128>}, {transform_indices = @transform_3, window_bounds = array<i64: 256, 128>}]} {
    %c0_i32 = arith.constant 0 : i32
    %0 = arith.cmpi eq, %arg2, %c0_i32 : i32
    %1 = arith.extui %0 : i1 to i32
    %c0_i32_0 = arith.constant 0 : i32
    %2 = arith.cmpi ne, %1, %c0_i32_0 : i32
    scf.if %2 {
      %cst_10 = arith.constant 0.000000e+00 : f32
      %12 = vector.broadcast %cst_10 : f32 to vector<256x128xf32>
      %c0_11 = arith.constant 0 : index
      %c0_12 = arith.constant 0 : index
      %13 = vector.load %arg7[%c0_11, %c0_12] : memref<256x128xf32, #tpu.memory_space<vmem>>, vector<256x128xf32>
      tpu.vector_store %arg7[%c0_11, %c0_12], %12 {strides = array<i32>} : memref<256x128xf32, #tpu.memory_space<vmem>>, vector<256x128xf32>,
    } else {
    }
    %c0 = arith.constant 0 : index
    %c0_1 = arith.constant 0 : index
    %3 = vector.load %arg7[%c0, %c0_1] : memref<256x128xf32, #tpu.memory_space<vmem>>, vector<256x128xf32>
    %c0_2 = arith.constant 0 : index
    %c0_3 = arith.constant 0 : index
    %4 = vector.load %arg3[%c0_2, %c0_3] : memref<256x32xbf16, #tpu.memory_space<vmem>>, vector<256x32xbf16>
    %c0_4 = arith.constant 0 : index
    %c0_5 = arith.constant 0 : index
    %5 = vector.load %arg4[%c0_4, %c0_5] : memref<32x128xbf16, #tpu.memory_space<vmem>>, vector<32x128xbf16>
    %cst = arith.constant dense<0.000000e+00> : vector<256x128xf32>
    %6 = tpu.matmul %4, %5, %cst {dimension_numbers = #tpu.dot_dimension_numbers<[1], [0], [0], [1], [0, 0, 1, 1], [], []>} : vector<256x32xbf16>, vector<32x128xbf16>, vector<256x128xf32> -> vector<256x128xf32>
    %7 = arith.addf %3, %6 : vector<256x128xf32>
    %c0_6 = arith.constant 0 : index
    %c0_7 = arith.constant 0 : index
    %8 = vector.load %arg7[%c0_6, %c0_7] : memref<256x128xf32, #tpu.memory_space<vmem>>, vector<256x128xf32>
    tpu.vector_store %arg7[%c0_6, %c0_7], %7 {strides = array<i32>} : memref<256x128xf32, #tpu.memory_space<vmem>>, vector<256x128xf32>,
    %c0_i32_8 = arith.constant 0 : i32
    %9 = arith.cmpi eq, %arg2, %c0_i32_8 : i32
    %10 = arith.extui %9 : i1 to i32
    %c0_i32_9 = arith.constant 0 : i32
    %11 = arith.cmpi ne, %10, %c0_i32_9 : i32
    scf.if %11 {
      %c0_10 = arith.constant 0 : index
      %c0_11 = arith.constant 0 : index
      %12 = vector.load %arg7[%c0_10, %c0_11] : memref<256x128xf32, #tpu.memory_space<vmem>>, vector<256x128xf32>
      %c0_12 = arith.constant 0 : index
      %c0_13 = arith.constant 0 : index
      %13 = vector.load %arg5[%c0_12, %c0_13] : memref<1x128xf32, #tpu.memory_space<vmem>>, vector<1x128xf32>
      %14 = vector.broadcast %13 : vector<1x128xf32> to vector<256x128xf32>
      %15 = arith.addf %12, %14 : vector<256x128xf32>
      %cst_14 = arith.constant 0.000000e+00 : f32
      %16 = vector.broadcast %cst_14 : f32 to vector<256x128xf32>
      %17 = arith.cmpf ogt, %15, %16 : vector<256x128xf32>
      %cst_15 = arith.constant 1.000000e-01 : f32
      %18 = vector.broadcast %cst_15 : f32 to vector<256x128xf32>
      %19 = arith.mulf %18, %15 : vector<256x128xf32>
      %20 = arith.select %17, %15, %19 : vector<256x128xi1>, vector<256x128xf32>
      %c0_16 = arith.constant 0 : index
      %c0_17 = arith.constant 0 : index
      %21 = vector.load %arg6[%c0_16, %c0_17] : memref<256x128xf32, #tpu.memory_space<vmem>>, vector<256x128xf32>
      tpu.vector_store %arg6[%c0_16, %c0_17], %20 {strides = array<i32>} : memref<256x128xf32, #tpu.memory_space<vmem>>, vector<256x128xf32>,
    } else {
    }
    return
  }
  func.func @transform_0(%arg0: i32, %arg1: i32, %arg2: i32) -> (i32, i32) {
    %c0_i32 = arith.constant 0 : i32
    return %arg0, %arg2 : i32, i32
  }
  func.func @transform_1(%arg0: i32, %arg1: i32, %arg2: i32) -> (i32, i32) {
    %c0_i32 = arith.constant 0 : i32
    return %arg2, %arg1 : i32, i32
  }
  func.func @transform_2(%arg0: i32, %arg1: i32, %arg2: i32) -> (i32, i32) {
    %c0_i32 = arith.constant 0 : i32
    %c0_i32_0 = arith.constant 0 : i32
    return %c0_i32, %arg1 : i32, i32
  }
  func.func @transform_3(%arg0: i32, %arg1: i32, %arg2: i32) -> (i32, i32) {
    %c0_i32 = arith.constant 0 : i32
    return %arg0, %arg1 : i32, i32
  }
}

</mosaic_0001>

<llo_original>
// kernel: tpu_custom_call.1
$region0: #{tpu_custom_call.1}
  #allocation0 [shape = 'u32[]', space=smem, size = 0x4, offset = 0x4, fixed_abs, tag = 'smem constant byte address 0x4 - core index']
  #allocation1 [shape = 'u32[144,128]{1,0:T(1,128)}', space=vmem, size = 0x12000, scoped, tag = 'internal scratch']
  #allocation2 [shape = 'f32[256,128]{1,0:T(8,128)}', space=vmem, size = 0x20000, scoped, tag = 'scratch operand']
  %s0 = inlined_call_operand.vmem [shape: bf16[512,32], index: 0, kind: input, shape index: {}]
  %s1 = inlined_call_operand.vmem [shape: bf16[32,128], index: 1, kind: input, shape index: {}]
  %s2 = inlined_call_operand.vmem [shape: f32[1,128], index: 2, kind: input, shape index: {}]
  %s3 = inlined_call_operand.hbm [shape: f32[512,128], index: 3, kind: output, shape index: {}]
  %s4 = sld [smem:[#allocation0]]
  $region53: #{tpu_custom_call.1} parent=0
    _
  %s6 = ssub.s32 1, %s4
  %s7 = scalar_select 0, %s6, %s4
  $region1: #{tpu_custom_call.1} parent=0
    #allocation3 [shape = 'u8[262144]{0}', space=vmem, size = 0x40000, scoped, tag = 'output window, operand 0']
    #allocation4 [shape = 's32[2]{0}', space=sflag, size = 0x8, scoped, tag = 'scoped memory for tpu_custom_call.1']
    %8 = vsyncpa [#allocation4], 0
    %s9 = scalar_lea.sflag [#allocation4], 1
    %10 = vsyncpa %s9, 0
    loop: start=0, step=1, limit=4
    $region2: #{tpu_custom_call.1} parent=1 // loop_pre_header
      _
    $region3: #{tpu_custom_call.1} parent=1 // loop_header
      %s12 = sphi 0, %s16
      %p13 = scmp.ge.s32.totalorder %s12, 4
      %s19 = sphi 0, %s38
      %s20 = sphi 0, %s34
      %s21 = sphi 0, %s30
      %s22 = sphi 0, %s19
      %s23 = sphi 0, %s20
      %s24 = sphi 0, %s21
      %s25 = sphi 0, %s22
      %s26 = sphi 0, %s23
      %s27 = sphi 0, %s24
      %s43 = sphi 0, %s45
      %s46 = sphi 0, %s43
      %s47 = sphi 0, %s46
      %s63 = sphi 0, %s47
      %s71 = sphi 0, %s73
      %s74 = sphi 0, %s71
      %s75 = sphi 0, %s74
      %s91 = sphi 0, %s75
      %s97 = sphi 0, %s99
      %s100 = sphi 0, %s97
      %s101 = sphi 0, %s100
      %s117 = sphi 0, %s101
      %s125 = sphi 0, %s127
      %s128 = sphi 0, %s125
      %s129 = sphi 0, %s128
      %s145 = sphi 0, %s129
    $region4: #{tpu_custom_call.1} parent=1 // loop_header_branch
      %15 = sbr.rel (%p13) target = $region8
    $region5: #{tpu_custom_call.1} parent=1 // loop_body
      %s17 = ssub.s32 %s12, 1
      %s18 = ssub.s32 %s12, 2
      %s28 = sadd.s32 1, %s21
      %p29 = scmp.ge.s32.totalorder %s28, 1
      %s30 = scalar_select %p29, 0, %s28
      %s31 = sadd.s32 1, %s20
      %s32 = scalar_select %p29, %s31, %s20
      %p33 = scmp.ge.s32.totalorder %s32, 1
      %s34 = scalar_select %p33, 0, %s32
      %s35 = sadd.s32 1, %s19
      %s36 = scalar_select %p33, %s35, %s19
      %p37 = scmp.ge.s32.totalorder %s36, 2
      %s38 = scalar_select %p37, 0, %s36
      %s39 = ssub.s32 %s19, %s38
      %s40 = ssub.s32 %s21, %s30
      %s41 = sor.u32 %s39, %s40
      %p42 = scmp.eq.s32.totalorder %s41, 0
      %s44 = sadd.s32 %s43, 1
      %s45 = scalar_select %p42, %s43, %s44
      %p48 = pneg %p42
      %p49 = scmp.eq.s32.totalorder %s12, 1
      %p50 = por %p48, %p49
      %p51 = scmp.ne.s32.totalorder %s43, %s46
      %p52 = scmp.eq.s32.totalorder %s12, 0
      %p53 = por %p51, %p52
      %p54 = scmp.ne.s32.totalorder %s43, %s46
      %p55 = scmp.eq.s32.totalorder %s17, 1
      %p56 = por %p54, %p55
      %p57 = scmp.ne.s32.totalorder %s46, %s47
      %p58 = scmp.eq.s32.totalorder %s17, 0
      %p59 = por %p57, %p58
      %p60 = scmp.ne.s32.totalorder %s46, %s47
      %p61 = scmp.eq.s32.totalorder %s18, 1
      %p62 = por %p60, %p61
      %p64 = scmp.ne.s32.totalorder %s47, %s63
      %p65 = scmp.eq.s32.totalorder %s18, 0
      %p66 = por %p64, %p65
      %s67 = ssub.s32 %s21, %s30
      %s68 = ssub.s32 %s20, %s34
      %s69 = sor.u32 %s67, %s68
      %p70 = scmp.eq.s32.totalorder %s69, 0
      %s72 = sadd.s32 %s71, 1
      %s73 = scalar_select %p70, %s71, %s72
      %p76 = pneg %p70
      %p77 = scmp.eq.s32.totalorder %s12, 1
      %p78 = por %p76, %p77
      %p79 = scmp.ne.s32.totalorder %s71, %s74
      %p80 = scmp.eq.s32.totalorder %s12, 0
      %p81 = por %p79, %p80
      %p82 = scmp.ne.s32.totalorder %s71, %s74
      %p83 = scmp.eq.s32.totalorder %s17, 1
      %p84 = por %p82, %p83
      %p85 = scmp.ne.s32.totalorder %s74, %s75
      %p86 = scmp.eq.s32.totalorder %s17, 0
      %p87 = por %p85, %p86
      %p88 = scmp.ne.s32.totalorder %s74, %s75
      %p89 = scmp.eq.s32.totalorder %s18, 1
      %p90 = por %p88, %p89
      %p92 = scmp.ne.s32.totalorder %s75, %s91
      %p93 = scmp.eq.s32.totalorder %s18, 0
      %p94 = por %p92, %p93
      %s95 = ssub.s32 %s20, %s34
      %p96 = scmp.eq.s32.totalorder %s95, 0
      %s98 = sadd.s32 %s97, 1
      %s99 = scalar_select %p96, %s97, %s98
      %p102 = pneg %p96
      %p103 = scmp.eq.s32.totalorder %s12, 1
      %p104 = por %p102, %p103
      %p105 = scmp.ne.s32.totalorder %s97, %s100
      %p106 = scmp.eq.s32.totalorder %s12, 0
      %p107 = por %p105, %p106
      %p108 = scmp.ne.s32.totalorder %s97, %s100
      %p109 = scmp.eq.s32.totalorder %s17, 1
      %p110 = por %p108, %p109
      %p111 = scmp.ne.s32.totalorder %s100, %s101
      %p112 = scmp.eq.s32.totalorder %s17, 0
      %p113 = por %p111, %p112
      %p114 = scmp.ne.s32.totalorder %s100, %s101
      %p115 = scmp.eq.s32.totalorder %s18, 1
      %p116 = por %p114, %p115
      %p118 = scmp.ne.s32.totalorder %s101, %s117
      %p119 = scmp.eq.s32.totalorder %s18, 0
      %p120 = por %p118, %p119
      %s121 = ssub.s32 %s19, %s38
      %s122 = ssub.s32 %s20, %s34
      %s123 = sor.u32 %s121, %s122
      %p124 = scmp.eq.s32.totalorder %s123, 0
      %s126 = sadd.s32 %s125, 1
      %s127 = scalar_select %p124, %s125, %s126
      %p130 = pneg %p124
      %p131 = scmp.eq.s32.totalorder %s12, 1
      %p132 = por %p130, %p131
      %p133 = scmp.ne.s32.totalorder %s125, %s128
      %p134 = scmp.eq.s32.totalorder %s12, 0
      %p135 = por %p133, %p134
      %p136 = scmp.ne.s32.totalorder %s125, %s128
      %p137 = scmp.eq.s32.totalorder %s17, 1
      %p138 = por %p136, %p137
      %p139 = scmp.ne.s32.totalorder %s128, %s129
      %p140 = scmp.eq.s32.totalorder %s17, 0
      %p141 = por %p139, %p140
      %p142 = scmp.ne.s32.totalorder %s128, %s129
      %p143 = scmp.eq.s32.totalorder %s18, 1
      %p144 = por %p142, %p143
      %p146 = scmp.ne.s32.totalorder %s129, %s145
      %p147 = scmp.eq.s32.totalorder %s18, 0
      %p148 = por %p146, %p147
      %p149 = scmp.le.s32.totalorder 1, %s12
      %p150 = scmp.lt.s32.totalorder %s12, 3
      %p151 = pnand %p149, %p150
      %p152 = pneg %p151
      // Predicated region
      $region9: #{tpu_custom_call.1} parent=5 // pred_check
        _
      $region10: #{tpu_custom_call.1} parent=5 // pred_check_branch
        %154 = sbr.rel (%p151) target = $region12
      $region11: #{tpu_custom_call.1} parent=5 // pred_region
        %s155 = ssub.s32 %s12, 1
        // Predicated region
        $region13: #{tpu_custom_call.1} parent=11 // pred_check
          %p156 = pneg %p87
        $region14: #{tpu_custom_call.1} parent=11 // pred_check_branch
          %158 = sbr.rel (%p156) target = $region16
        $region15: #{tpu_custom_call.1} parent=11 // pred_region
          %s159 = smul.u32 4, %s24
          %p160 = scmp.lt.s32.totalorder %s159, 3
          %s161 = scalar_select %p160, %s159, 3
          %p162 = scmp.lt.s32.totalorder %s23, 0
          %s163 = scalar_select %p162, %s23, 0
          %s164 = sadd.s32 %s163, %s161
          %s165 = smul.addr %s164, 4
          %s166 = scalar_lea.vmem %s1, %s165
          %s167 = smul.u32 4, %s24
        $region16: #{tpu_custom_call.1} parent=11 // pred_fallthru
          _
        // Predicated region
        $region17: #{tpu_custom_call.1} parent=11 // pred_check
          %p168 = pneg %p113
        $region18: #{tpu_custom_call.1} parent=11 // pred_check_branch
          %170 = sbr.rel (%p168) target = $region20
        $region19: #{tpu_custom_call.1} parent=11 // pred_region
          %p171 = scmp.lt.s32.totalorder %s23, 0
          %s172 = scalar_select %p171, %s23, 0
          %s173 = scalar_lea.vmem %s2, %s172
        $region20: #{tpu_custom_call.1} parent=11 // pred_fallthru
          _
      $region12: #{tpu_custom_call.1} parent=5 // pred_fallthru
        _
      %p174 = scmp.lt.s32.totalorder %s12, 2
      // Predicated region
      $region21: #{tpu_custom_call.1} parent=5 // pred_check
        %p175 = pneg %p174
      $region22: #{tpu_custom_call.1} parent=5 // pred_check_branch
        %177 = sbr.rel (%p175) target = $region24
      $region23: #{tpu_custom_call.1} parent=5 // pred_region
        // Predicated region
        $region25: #{tpu_custom_call.1} parent=23 // pred_check
          %p178 = pneg %p53
        $region26: #{tpu_custom_call.1} parent=23 // pred_check_branch
          %180 = sbr.rel (%p178) target = $region28
        $region27: #{tpu_custom_call.1} parent=23 // pred_region
          %s181 = smul.u32 32, %s19
          %p182 = scmp.lt.s32.totalorder %s181, 63
          %s183 = scalar_select %p182, %s181, 63
          %p184 = scmp.lt.s32.totalorder %s21, 0
          %s185 = scalar_select %p184, %s21, 0
          %s186 = sadd.s32 %s185, %s183
          %s187 = smul.addr %s186, 4
          %s188 = scalar_lea.vmem %s0, %s187
          %s189 = smul.u32 32, %s19
        $region28: #{tpu_custom_call.1} parent=23 // pred_fallthru
          _
      $region24: #{tpu_custom_call.1} parent=5 // pred_fallthru
        _
      %p190 = scmp.le.s32.totalorder 1, %s12
      %p191 = scmp.lt.s32.totalorder %s12, 3
      %p192 = pnand %p190, %p191
      %p193 = pneg %p192
      // Predicated region
      $region29: #{tpu_custom_call.1} parent=5 // pred_check
        _
      $region30: #{tpu_custom_call.1} parent=5 // pred_check_branch
        %195 = sbr.rel (%p192) target = $region32
      $region31: #{tpu_custom_call.1} parent=5 // pred_region
        %s196 = ssub.s32 %s12, 1
        %s197 = smul.u32 32, %s22
        %p198 = scmp.lt.s32.totalorder %s197, 63
        %s199 = scalar_select %p198, %s197, 63
        %p200 = scmp.lt.s32.totalorder %s24, 0
        %s201 = scalar_select %p200, %s24, 0
        %s202 = sadd.s32 %s201, %s199
        %s203 = smul.addr %s202, 4
        %s204 = scalar_lea.vmem %s0, %s203
        %p205 = pneg %p59
        %p206 = pneg %p56
        %s207 = smul.u32 4, %s24
        %p208 = scmp.lt.s32.totalorder %s207, 3
        %s209 = scalar_select %p208, %s207, 3
        %p210 = scmp.lt.s32.totalorder %s23, 0
        %s211 = scalar_select %p210, %s23, 0
        %s212 = sadd.s32 %s211, %s209
        %s213 = smul.addr %s212, 4
        %s214 = scalar_lea.vmem %s1, %s213
        %p215 = pneg %p87
        %p216 = pneg %p84
        %p217 = scmp.lt.s32.totalorder %s23, 0
        %s218 = scalar_select %p217, %s23, 0
        %s219 = scalar_lea.vmem %s2, %s218
        %p220 = pneg %p113
        %p221 = pneg %p110
        %p222 = pneg %p141
        %p223 = pneg %p138
        %s224 = sand.u32 %s128, 1
        %s225 = scalar_lea.sflag [#allocation4], %s224
        %s226 = sand.u32 %s128, 1
        %s227 = smul.addr %s226, 256
        %s228 = scalar_lea.vmem [#allocation3], %s227
        %s229 = smul.u32 32, %s22
        %p230 = scmp.lt.s32.totalorder %s229, 63
        %s231 = scalar_select %p230, %s229, 63
        %p232 = scmp.lt.s32.totalorder %s24, 0
        %s233 = scalar_select %p232, %s24, 0
        %s234 = sadd.s32 %s233, %s231
        %s235 = smul.addr %s234, 4
        %s236 = scalar_lea.vmem %s0, %s235
        %s237 = smul.u32 32, %s22
        %s238 = smul.u32 4, %s24
        %p239 = scmp.lt.s32.totalorder %s238, 3
        %s240 = scalar_select %p239, %s238, 3
        %p241 = scmp.lt.s32.totalorder %s23, 0
        %s242 = scalar_select %p241, %s23, 0
        %s243 = sadd.s32 %s242, %s240
        %s244 = smul.addr %s243, 4
        %s245 = scalar_lea.vmem %s1, %s244
        %s246 = smul.u32 4, %s24
        %p247 = scmp.lt.s32.totalorder %s23, 0
        %s248 = scalar_select %p247, %s23, 0
        %s249 = scalar_lea.vmem %s2, %s248
        %s250 = smul.u32 32, %s22
        %p252 = scmp.eq.s32.totalorder %s24, 0
        // Predicated region
        $region33: #{tpu_custom_call.1} parent=31 // pred_check
          %p253 = pneg %p252
        $region34: #{tpu_custom_call.1} parent=31 // pred_check_branch
          %255 = sbr.rel (%p253) target = $region36
        $region35: #{tpu_custom_call.1} parent=31 // pred_region
          %256 = vst [vmem:[#allocation2] sm:$0xff] 0.0
          %257 = vst [vmem:[#allocation2 + $0x8] sm:$0xff] 0.0
          %258 = vst [vmem:[#allocation2 + $0x10] sm:$0xff] 0.0
          %259 = vst [vmem:[#allocation2 + $0x18] sm:$0xff] 0.0
          %260 = vst [vmem:[#allocation2 + $0x20] sm:$0xff] 0.0
          %261 = vst [vmem:[#allocation2 + $0x28] sm:$0xff] 0.0
          %262 = vst [vmem:[#allocation2 + $0x30] sm:$0xff] 0.0
          %263 = vst [vmem:[#allocation2 + $0x38] sm:$0xff] 0.0
          %264 = vst [vmem:[#allocation2 + $0x40] sm:$0xff] 0.0
          %265 = vst [vmem:[#allocation2 + $0x48] sm:$0xff] 0.0
          %266 = vst [vmem:[#allocation2 + $0x50] sm:$0xff] 0.0
          %267 = vst [vmem:[#allocation2 + $0x58] sm:$0xff] 0.0
          %268 = vst [vmem:[#allocation2 + $0x60] sm:$0xff] 0.0
          %269 = vst [vmem:[#allocation2 + $0x68] sm:$0xff] 0.0
          %270 = vst [vmem:[#allocation2 + $0x70] sm:$0xff] 0.0
          %271 = vst [vmem:[#allocation2 + $0x78] sm:$0xff] 0.0
          %272 = vst [vmem:[#allocation2 + $0x80] sm:$0xff] 0.0
          %273 = vst [vmem:[#allocation2 + $0x88] sm:$0xff] 0.0
          %274 = vst [vmem:[#allocation2 + $0x90] sm:$0xff] 0.0
          %275 = vst [vmem:[#allocation2 + $0x98] sm:$0xff] 0.0
          %276 = vst [vmem:[#allocation2 + $0xa0] sm:$0xff] 0.0
          %277 = vst [vmem:[#allocation2 + $0xa8] sm:$0xff] 0.0
          %278 = vst [vmem:[#allocation2 + $0xb0] sm:$0xff] 0.0
          %279 = vst [vmem:[#allocation2 + $0xb8] sm:$0xff] 0.0
          %280 = vst [vmem:[#allocation2 + $0xc0] sm:$0xff] 0.0
          %281 = vst [vmem:[#allocation2 + $0xc8] sm:$0xff] 0.0
          %282 = vst [vmem:[#allocation2 + $0xd0] sm:$0xff] 0.0
          %283 = vst [vmem:[#allocation2 + $0xd8] sm:$0xff] 0.0
          %284 = vst [vmem:[#allocation2 + $0xe0] sm:$0xff] 0.0
          %285 = vst [vmem:[#allocation2 + $0xe8] sm:$0xff] 0.0
          %286 = vst [vmem:[#allocation2 + $0xf0] sm:$0xff] 0.0
          %287 = vst [vmem:[#allocation2 + $0xf8] sm:$0xff] 0.0
        $region36: #{tpu_custom_call.1} parent=31 // pred_fallthru
          _
        %v288 = vld [vmem:[#allocation2] sm:$0xff]
        %v289 = vld [vmem:[#allocation2 + $0x8] sm:$0xff]
        %v290 = vld [vmem:[#allocation2 + $0x10] sm:$0xff]
        %v291 = vld [vmem:[#allocation2 + $0x18] sm:$0xff]
        %v292 = vld [vmem:[#allocation2 + $0x20] sm:$0xff]
        %v293 = vld [vmem:[#allocation2 + $0x28] sm:$0xff]
        %v294 = vld [vmem:[#allocation2 + $0x30] sm:$0xff]
        %v295 = vld [vmem:[#allocation2 + $0x38] sm:$0xff]
        %v296 = vld [vmem:[#allocation2 + $0x40] sm:$0xff]
        %v297 = vld [vmem:[#allocation2 + $0x48] sm:$0xff]
        %v298 = vld [vmem:[#allocation2 + $0x50] sm:$0xff]
        %v299 = vld [vmem:[#allocation2 + $0x58] sm:$0xff]
        %v300 = vld [vmem:[#allocation2 + $0x60] sm:$0xff]
        %v301 = vld [vmem:[#allocation2 + $0x68] sm:$0xff]
        %v302 = vld [vmem:[#allocation2 + $0x70] sm:$0xff]
        %v303 = vld [vmem:[#allocation2 + $0x78] sm:$0xff]
        %v304 = vld [vmem:[#allocation2 + $0x80] sm:$0xff]
        %v305 = vld [vmem:[#allocation2 + $0x88] sm:$0xff]
        %v306 = vld [vmem:[#allocation2 + $0x90] sm:$0xff]
        %v307 = vld [vmem:[#allocation2 + $0x98] sm:$0xff]
        %v308 = vld [vmem:[#allocation2 + $0xa0] sm:$0xff]
        %v309 = vld [vmem:[#allocation2 + $0xa8] sm:$0xff]
        %v310 = vld [vmem:[#allocation2 + $0xb0] sm:$0xff]
        %v311 = vld [vmem:[#allocation2 + $0xb8] sm:$0xff]
        %v312 = vld [vmem:[#allocation2 + $0xc0] sm:$0xff]
        %v313 = vld [vmem:[#allocation2 + $0xc8] sm:$0xff]
        %v314 = vld [vmem:[#allocation2 + $0xd0] sm:$0xff]
        %v315 = vld [vmem:[#allocation2 + $0xd8] sm:$0xff]
        %v316 = vld [vmem:[#allocation2 + $0xe0] sm:$0xff]
        %v317 = vld [vmem:[#allocation2 + $0xe8] sm:$0xff]
        %v318 = vld [vmem:[#allocation2 + $0xf0] sm:$0xff]
        %v319 = vld [vmem:[#allocation2 + $0xf8] sm:$0xff]
        %v320 = vld [vmem:[%s236] sm:$0xf]
        %v321 = vld [vmem:[%s236 + $0x4] sm:$0xf]
        %v322 = vld [vmem:[%s236 + $0x8] sm:$0xf]
        %v323 = vld [vmem:[%s236 + $0xc] sm:$0xf]
        %v324 = vld [vmem:[%s236 + $0x10] sm:$0xf]
        %v325 = vld [vmem:[%s236 + $0x14] sm:$0xf]
        %v326 = vld [vmem:[%s236 + $0x18] sm:$0xf]
        %v327 = vld [vmem:[%s236 + $0x1c] sm:$0xf]
        %v328 = vld [vmem:[%s236 + $0x20] sm:$0xf]
        %v329 = vld [vmem:[%s236 + $0x24] sm:$0xf]
        %v330 = vld [vmem:[%s236 + $0x28] sm:$0xf]
        %v331 = vld [vmem:[%s236 + $0x2c] sm:$0xf]
        %v332 = vld [vmem:[%s236 + $0x30] sm:$0xf]
        %v333 = vld [vmem:[%s236 + $0x34] sm:$0xf]
        %v334 = vld [vmem:[%s236 + $0x38] sm:$0xf]
        %v335 = vld [vmem:[%s236 + $0x3c] sm:$0xf]
        %v336 = vld [vmem:[%s236 + $0x40] sm:$0xf]
        %v337 = vld [vmem:[%s236 + $0x44] sm:$0xf]
        %v338 = vld [vmem:[%s236 + $0x48] sm:$0xf]
        %v339 = vld [vmem:[%s236 + $0x4c] sm:$0xf]
        %v340 = vld [vmem:[%s236 + $0x50] sm:$0xf]
        %v341 = vld [vmem:[%s236 + $0x54] sm:$0xf]
        %v342 = vld [vmem:[%s236 + $0x58] sm:$0xf]
        %v343 = vld [vmem:[%s236 + $0x5c] sm:$0xf]
        %v344 = vld [vmem:[%s236 + $0x60] sm:$0xf]
        %v345 = vld [vmem:[%s236 + $0x64] sm:$0xf]
        %v346 = vld [vmem:[%s236 + $0x68] sm:$0xf]
        %v347 = vld [vmem:[%s236 + $0x6c] sm:$0xf]
        %v348 = vld [vmem:[%s236 + $0x70] sm:$0xf]
        %v349 = vld [vmem:[%s236 + $0x74] sm:$0xf]
        %v350 = vld [vmem:[%s236 + $0x78] sm:$0xf]
        %v351 = vld [vmem:[%s236 + $0x7c] sm:$0xf]
        %v352 = vld [vmem:[%s245] sm:$0xf]
        %v353 = vld [vmem:[%s245 + $0x4] sm:$0xf]
        %v354 = vld [vmem:[%s245 + $0x8] sm:$0xf]
        %v355 = vld [vmem:[%s245 + $0xc] sm:$0xf]
        %v388 = vunpack.c.l.b16 %v320
        %v389 = vunpack.c.l.b16 %v321
        %v390 = vunpack.c.l.b16 %v322
        %v391 = vunpack.c.l.b16 %v323
        %v392 = vunpack.c.l.b16 %v324
        %v393 = vunpack.c.l.b16 %v325
        %v394 = vunpack.c.l.b16 %v326
        %v395 = vunpack.c.l.b16 %v327
        %v396 = vunpack.c.l.b16 %v328
        %v397 = vunpack.c.l.b16 %v329
        %v398 = vunpack.c.l.b16 %v330
        %v399 = vunpack.c.l.b16 %v331
        %v400 = vunpack.c.l.b16 %v332
        %v401 = vunpack.c.l.b16 %v333
        %v402 = vunpack.c.l.b16 %v334
        %v403 = vunpack.c.l.b16 %v335
        %v404 = vunpack.c.l.b16 %v336
        %v405 = vunpack.c.l.b16 %v337
        %v406 = vunpack.c.l.b16 %v338
        %v407 = vunpack.c.l.b16 %v339
        %v408 = vunpack.c.l.b16 %v340
        %v409 = vunpack.c.l.b16 %v341
        %v410 = vunpack.c.l.b16 %v342
        %v411 = vunpack.c.l.b16 %v343
        %v412 = vunpack.c.l.b16 %v344
        %v413 = vunpack.c.l.b16 %v345
        %v414 = vunpack.c.l.b16 %v346
        %v415 = vunpack.c.l.b16 %v347
        %v416 = vunpack.c.l.b16 %v348
        %v417 = vunpack.c.l.b16 %v349
        %v418 = vunpack.c.l.b16 %v350
        %v419 = vunpack.c.l.b16 %v351
        %v420 = vpack.c.b16 %v389, %v388
        %v421 = vpack.c.b16 %v391, %v390
        %v422 = vpack.c.b16 %v393, %v392
        %v423 = vpack.c.b16 %v395, %v394
        %v424 = vpack.c.b16 %v397, %v396
        %v425 = vpack.c.b16 %v399, %v398
        %v426 = vpack.c.b16 %v401, %v400
        %v427 = vpack.c.b16 %v403, %v402
        %v428 = vpack.c.b16 %v405, %v404
        %v429 = vpack.c.b16 %v407, %v406
        %v430 = vpack.c.b16 %v409, %v408
        %v431 = vpack.c.b16 %v411, %v410
        %v432 = vpack.c.b16 %v413, %v412
        %v433 = vpack.c.b16 %v415, %v414
        %v434 = vpack.c.b16 %v417, %v416
        %v435 = vpack.c.b16 %v419, %v418
        %v440 = vunpack.c.l.b16 %v352
        %v441 = vunpack.c.l.b16 %v353
        %v442 = vunpack.c.l.b16 %v354
        %v443 = vunpack.c.l.b16 %v355
        %v444 = vpack.c.b16 %v441, %v440
        %v445 = vpack.c.b16 %v443, %v442
        %vm448 = vcmask 261120
        %v450 = vsel %vm448, %v420, 0
        %v453 = vsel %vm448, %v421, 0
        %v456 = vsel %vm448, %v422, 0
        %v459 = vsel %vm448, %v423, 0
        %v462 = vsel %vm448, %v424, 0
        %v465 = vsel %vm448, %v425, 0
        %v468 = vsel %vm448, %v426, 0
        %v471 = vsel %vm448, %v427, 0
        %v474 = vsel %vm448, %v428, 0
        %v477 = vsel %vm448, %v429, 0
        %v480 = vsel %vm448, %v430, 0
        %v483 = vsel %vm448, %v431, 0
        %v486 = vsel %vm448, %v432, 0
        %v489 = vsel %vm448, %v433, 0
        %v492 = vsel %vm448, %v434, 0
        %v495 = vsel %vm448, %v435, 0
        %497 = vmatprep.subr.bf16.mxu0 0
        %498 = vmatpush1.bf16.msra.mxu0 %v444
        %499 = vmatprep.subr.bf16.mxu0 0
        %500 = vmatpush1.bf16.msra.mxu0 %v445
        %501 = vmatprep.subr.bf16.mxu0 0
        %502 = vmatpush1.bf16.msra.mxu0 0
        %503 = vmatprep.subr.bf16.mxu0 0
        %504 = vmatpush1.bf16.msra.mxu0 0
        %505 = vmatprep.subr.bf16.mxu0 0
        %506 = vmatpush1.bf16.msra.mxu0 0
        %507 = vmatprep.subr.bf16.mxu0 0
        %508 = vmatpush1.bf16.msra.mxu0 0
        %509 = vmatprep.subr.bf16.mxu0 0
        %510 = vmatpush1.bf16.msra.mxu0 0
        %511 = vmatprep.subr.bf16.mxu0 0
        %512 = vmatpush1.bf16.msra.mxu0 0
        %513 = vmatprep.subr.bf16.mxu0 0
        %514 = vmatpush1.bf16.msra.mxu0 0
        %515 = vmatprep.subr.bf16.mxu0 0
        %516 = vmatpush1.bf16.msra.mxu0 0
        %517 = vmatprep.subr.bf16.mxu0 0
        %518 = vmatpush1.bf16.msra.mxu0 0
        %519 = vmatprep.subr.bf16.mxu0 0
        %520 = vmatpush1.bf16.msra.mxu0 0
        %521 = vmatprep.subr.bf16.mxu0 0
        %522 = vmatpush1.bf16.msra.mxu0 0
        %523 = vmatprep.subr.bf16.mxu0 0
        %524 = vmatpush1.bf16.msra.mxu0 0
        %525 = vmatprep.subr.bf16.mxu0 0
        %526 = vmatpush1.bf16.msra.mxu0 0
        %527 = vmatprep.subr.bf16.mxu0 0
        %528 = vmatpush1.bf16.msra.mxu0 0
        %529 = vmatprep.mubr.bf16.mxu0 0
        %530 = vmatmul.mubr.bf16.gmra.mrb[0].mxu0 %v450
        %v531 = vpop.f32.mrb[0].mxu0
        %v532 = vadd.f32 0.0, %v531
        %v533 = vpop.f32.mrb[0].mxu0
        %v534 = vpop.f32.mrb[0].mxu0
        %v535 = vadd.f32 0.0, %v534
        %v536 = vpop.f32.mrb[0].mxu0
        %537 = vmatprep.mubr.bf16.mxu0 0
        %538 = vmatmul.mubr.bf16.gmra.mrb[0].mxu0 %v453
        %v539 = vpop.f32.mrb[0].mxu0
        %v540 = vadd.f32 0.0, %v539
        %v541 = vpop.f32.mrb[0].mxu0
        %v542 = vpop.f32.mrb[0].mxu0
        %v543 = vadd.f32 0.0, %v542
        %v544 = vpop.f32.mrb[0].mxu0
        %545 = vmatprep.mubr.bf16.mxu0 0
        %546 = vmatmul.mubr.bf16.gmra.mrb[0].mxu0 %v456
        %v547 = vpop.f32.mrb[0].mxu0
        %v548 = vadd.f32 0.0, %v547
        %v549 = vpop.f32.mrb[0].mxu0
        %v550 = vpop.f32.mrb[0].mxu0
        %v551 = vadd.f32 0.0, %v550
        %v552 = vpop.f32.mrb[0].mxu0
        %553 = vmatprep.mubr.bf16.mxu0 0
        %554 = vmatmul.mubr.bf16.gmra.mrb[0].mxu0 %v459
        %v555 = vpop.f32.mrb[0].mxu0
        %v556 = vadd.f32 0.0, %v555
        %v557 = vpop.f32.mrb[0].mxu0
        %v558 = vpop.f32.mrb[0].mxu0
        %v559 = vadd.f32 0.0, %v558
        %v560 = vpop.f32.mrb[0].mxu0
        %561 = vmatprep.mubr.bf16.mxu0 0
        %562 = vmatmul.mubr.bf16.gmra.mrb[0].mxu0 %v462
        %v563 = vpop.f32.mrb[0].mxu0
        %v564 = vadd.f32 0.0, %v563
        %v565 = vpop.f32.mrb[0].mxu0
        %v566 = vpop.f32.mrb[0].mxu0
        %v567 = vadd.f32 0.0, %v566
        %v568 = vpop.f32.mrb[0].mxu0
        %569 = vmatprep.mubr.bf16.mxu0 0
        %570 = vmatmul.mubr.bf16.gmra.mrb[0].mxu0 %v465
        %v571 = vpop.f32.mrb[0].mxu0
        %v572 = vadd.f32 0.0, %v571
        %v573 = vpop.f32.mrb[0].mxu0
        %v574 = vpop.f32.mrb[0].mxu0
        %v575 = vadd.f32 0.0, %v574
        %v576 = vpop.f32.mrb[0].mxu0
        %577 = vmatprep.mubr.bf16.mxu0 0
        %578 = vmatmul.mubr.bf16.gmra.mrb[0].mxu0 %v468
        %v579 = vpop.f32.mrb[0].mxu0
        %v580 = vadd.f32 0.0, %v579
        %v581 = vpop.f32.mrb[0].mxu0
        %v582 = vpop.f32.mrb[0].mxu0
        %v583 = vadd.f32 0.0, %v582
        %v584 = vpop.f32.mrb[0].mxu0
        %585 = vmatprep.mubr.bf16.mxu0 0
        %586 = vmatmul.mubr.bf16.gmra.mrb[0].mxu0 %v471
        %v587 = vpop.f32.mrb[0].mxu0
        %v588 = vadd.f32 0.0, %v587
        %v589 = vpop.f32.mrb[0].mxu0
        %v590 = vpop.f32.mrb[0].mxu0
        %v591 = vadd.f32 0.0, %v590
        %v592 = vpop.f32.mrb[0].mxu0
        %593 = vmatprep.mubr.bf16.mxu0 0
        %594 = vmatmul.mubr.bf16.gmra.mrb[0].mxu0 %v474
        %v595 = vpop.f32.mrb[0].mxu0
        %v596 = vadd.f32 0.0, %v595
        %v597 = vpop.f32.mrb[0].mxu0
        %v598 = vpop.f32.mrb[0].mxu0
        %v599 = vadd.f32 0.0, %v598
        %v600 = vpop.f32.mrb[0].mxu0
        %601 = vmatprep.mubr.bf16.mxu0 0
        %602 = vmatmul.mubr.bf16.gmra.mrb[0].mxu0 %v477
        %v603 = vpop.f32.mrb[0].mxu0
        %v604 = vadd.f32 0.0, %v603
        %v605 = vpop.f32.mrb[0].mxu0
        %v606 = vpop.f32.mrb[0].mxu0
        %v607 = vadd.f32 0.0, %v606
        %v608 = vpop.f32.mrb[0].mxu0
        %609 = vmatprep.mubr.bf16.mxu0 0
        %610 = vmatmul.mubr.bf16.gmra.mrb[0].mxu0 %v480
        %v611 = vpop.f32.mrb[0].mxu0
        %v612 = vadd.f32 0.0, %v611
        %v613 = vpop.f32.mrb[0].mxu0
        %v614 = vpop.f32.mrb[0].mxu0
        %v615 = vadd.f32 0.0, %v614
        %v616 = vpop.f32.mrb[0].mxu0
        %617 = vmatprep.mubr.bf16.mxu0 0
        %618 = vmatmul.mubr.bf16.gmra.mrb[0].mxu0 %v483
        %v619 = vpop.f32.mrb[0].mxu0
        %v620 = vadd.f32 0.0, %v619
        %v621 = vpop.f32.mrb[0].mxu0
        %v622 = vpop.f32.mrb[0].mxu0
        %v623 = vadd.f32 0.0, %v622
        %v624 = vpop.f32.mrb[0].mxu0
        %625 = vmatprep.mubr.bf16.mxu0 0
        %626 = vmatmul.mubr.bf16.gmra.mrb[0].mxu0 %v486
        %v627 = vpop.f32.mrb[0].mxu0
        %v628 = vadd.f32 0.0, %v627
        %v629 = vpop.f32.mrb[0].mxu0
        %v630 = vpop.f32.mrb[0].mxu0
        %v631 = vadd.f32 0.0, %v630
        %v632 = vpop.f32.mrb[0].mxu0
        %633 = vmatprep.mubr.bf16.mxu0 0
        %634 = vmatmul.mubr.bf16.gmra.mrb[0].mxu0 %v489
        %v635 = vpop.f32.mrb[0].mxu0
        %v636 = vadd.f32 0.0, %v635
        %v637 = vpop.f32.mrb[0].mxu0
        %v638 = vpop.f32.mrb[0].mxu0
        %v639 = vadd.f32 0.0, %v638
        %v640 = vpop.f32.mrb[0].mxu0
        %641 = vmatprep.mubr.bf16.mxu0 0
        %642 = vmatmul.mubr.bf16.gmra.mrb[0].mxu0 %v492
        %v643 = vpop.f32.mrb[0].mxu0
        %v644 = vadd.f32 0.0, %v643
        %v645 = vpop.f32.mrb[0].mxu0
        %v646 = vpop.f32.mrb[0].mxu0
        %v647 = vadd.f32 0.0, %v646
        %v648 = vpop.f32.mrb[0].mxu0
        %649 = vmatprep.mubr.bf16.mxu0 0
        %650 = vmatmul.mubr.bf16.gmra.mrb[0].mxu0 %v495
        %v651 = vpop.f32.mrb[0].mxu0
        %v652 = vadd.f32 0.0, %v651
        %v653 = vpop.f32.mrb[0].mxu0
        %v654 = vpop.f32.mrb[0].mxu0
        %v655 = vadd.f32 0.0, %v654
        %v656 = vpop.f32.mrb[0].mxu0
        %657 = vdwg.mxu0
        %v658 = vadd.f32 %v288, %v532
        %v659 = vadd.f32 %v289, %v535
        %v660 = vadd.f32 %v290, %v540
        %v661 = vadd.f32 %v291, %v543
        %v662 = vadd.f32 %v292, %v548
        %v663 = vadd.f32 %v293, %v551
        %v664 = vadd.f32 %v294, %v556
        %v665 = vadd.f32 %v295, %v559
        %v666 = vadd.f32 %v296, %v564
        %v667 = vadd.f32 %v297, %v567
        %v668 = vadd.f32 %v298, %v572
        %v669 = vadd.f32 %v299, %v575
        %v670 = vadd.f32 %v300, %v580
        %v671 = vadd.f32 %v301, %v583
        %v672 = vadd.f32 %v302, %v588
        %v673 = vadd.f32 %v303, %v591
        %v674 = vadd.f32 %v304, %v596
        %v675 = vadd.f32 %v305, %v599
        %v676 = vadd.f32 %v306, %v604
        %v677 = vadd.f32 %v307, %v607
        %v678 = vadd.f32 %v308, %v612
        %v679 = vadd.f32 %v309, %v615
        %v680 = vadd.f32 %v310, %v620
        %v681 = vadd.f32 %v311, %v623
        %v682 = vadd.f32 %v312, %v628
        %v683 = vadd.f32 %v313, %v631
        %v684 = vadd.f32 %v314, %v636
        %v685 = vadd.f32 %v315, %v639
        %v686 = vadd.f32 %v316, %v644
        %v687 = vadd.f32 %v317, %v647
        %v688 = vadd.f32 %v318, %v652
        %v689 = vadd.f32 %v319, %v655
        %690 = vst [vmem:[#allocation2] sm:$0xff] %v658
        %691 = vst [vmem:[#allocation2 + $0x8] sm:$0xff] %v659
        %692 = vst [vmem:[#allocation2 + $0x10] sm:$0xff] %v660
        %693 = vst [vmem:[#allocation2 + $0x18] sm:$0xff] %v661
        %694 = vst [vmem:[#allocation2 + $0x20] sm:$0xff] %v662
        %695 = vst [vmem:[#allocation2 + $0x28] sm:$0xff] %v663
        %696 = vst [vmem:[#allocation2 + $0x30] sm:$0xff] %v664
        %697 = vst [vmem:[#allocation2 + $0x38] sm:$0xff] %v665
        %698 = vst [vmem:[#allocation2 + $0x40] sm:$0xff] %v666
        %699 = vst [vmem:[#allocation2 + $0x48] sm:$0xff] %v667
        %700 = vst [vmem:[#allocation2 + $0x50] sm:$0xff] %v668
        %701 = vst [vmem:[#allocation2 + $0x58] sm:$0xff] %v669
        %702 = vst [vmem:[#allocation2 + $0x60] sm:$0xff] %v670
        %703 = vst [vmem:[#allocation2 + $0x68] sm:$0xff] %v671
        %704 = vst [vmem:[#allocation2 + $0x70] sm:$0xff] %v672
        %705 = vst [vmem:[#allocation2 + $0x78] sm:$0xff] %v673
        %706 = vst [vmem:[#allocation2 + $0x80] sm:$0xff] %v674
        %707 = vst [vmem:[#allocation2 + $0x88] sm:$0xff] %v675
        %708 = vst [vmem:[#allocation2 + $0x90] sm:$0xff] %v676
        %709 = vst [vmem:[#allocation2 + $0x98] sm:$0xff] %v677
        %710 = vst [vmem:[#allocation2 + $0xa0] sm:$0xff] %v678
        %711 = vst [vmem:[#allocation2 + $0xa8] sm:$0xff] %v679
        %712 = vst [vmem:[#allocation2 + $0xb0] sm:$0xff] %v680
        %713 = vst [vmem:[#allocation2 + $0xb8] sm:$0xff] %v681
        %714 = vst [vmem:[#allocation2 + $0xc0] sm:$0xff] %v682
        %715 = vst [vmem:[#allocation2 + $0xc8] sm:$0xff] %v683
        %716 = vst [vmem:[#allocation2 + $0xd0] sm:$0xff] %v684
        %717 = vst [vmem:[#allocation2 + $0xd8] sm:$0xff] %v685
        %718 = vst [vmem:[#allocation2 + $0xe0] sm:$0xff] %v686
        %719 = vst [vmem:[#allocation2 + $0xe8] sm:$0xff] %v687
        %720 = vst [vmem:[#allocation2 + $0xf0] sm:$0xff] %v688
        %721 = vst [vmem:[#allocation2 + $0xf8] sm:$0xff] %v689
        // Predicated region
        $region37: #{tpu_custom_call.1} parent=31 // pred_check
          %p722 = pneg %p252
        $region38: #{tpu_custom_call.1} parent=31 // pred_check_branch
          %724 = sbr.rel (%p722) target = $region40
        $region39: #{tpu_custom_call.1} parent=31 // pred_region
          %v725 = vld [vmem:[#allocation2] sm:$0xff]
          %v726 = vld [vmem:[#allocation2 + $0x8] sm:$0xff]
          %v727 = vld [vmem:[#allocation2 + $0x10] sm:$0xff]
          %v728 = vld [vmem:[#allocation2 + $0x18] sm:$0xff]
          %v729 = vld [vmem:[#allocation2 + $0x20] sm:$0xff]
          %v730 = vld [vmem:[#allocation2 + $0x28] sm:$0xff]
          %v731 = vld [vmem:[#allocation2 + $0x30] sm:$0xff]
          %v732 = vld [vmem:[#allocation2 + $0x38] sm:$0xff]
          %v733 = vld [vmem:[#allocation2 + $0x40] sm:$0xff]
          %v734 = vld [vmem:[#allocation2 + $0x48] sm:$0xff]
          %v735 = vld [vmem:[#allocation2 + $0x50] sm:$0xff]
          %v736 = vld [vmem:[#allocation2 + $0x58] sm:$0xff]
          %v737 = vld [vmem:[#allocation2 + $0x60] sm:$0xff]
          %v738 = vld [vmem:[#allocation2 + $0x68] sm:$0xff]
          %v739 = vld [vmem:[#allocation2 + $0x70] sm:$0xff]
          %v740 = vld [vmem:[#allocation2 + $0x78] sm:$0xff]
          %v741 = vld [vmem:[#allocation2 + $0x80] sm:$0xff]
          %v742 = vld [vmem:[#allocation2 + $0x88] sm:$0xff]
          %v743 = vld [vmem:[#allocation2 + $0x90] sm:$0xff]
          %v744 = vld [vmem:[#allocation2 + $0x98] sm:$0xff]
          %v745 = vld [vmem:[#allocation2 + $0xa0] sm:$0xff]
          %v746 = vld [vmem:[#allocation2 + $0xa8] sm:$0xff]
          %v747 = vld [vmem:[#allocation2 + $0xb0] sm:$0xff]
          %v748 = vld [vmem:[#allocation2 + $0xb8] sm:$0xff]
          %v749 = vld [vmem:[#allocation2 + $0xc0] sm:$0xff]
          %v750 = vld [vmem:[#allocation2 + $0xc8] sm:$0xff]
          %v751 = vld [vmem:[#allocation2 + $0xd0] sm:$0xff]
          %v752 = vld [vmem:[#allocation2 + $0xd8] sm:$0xff]
          %v753 = vld [vmem:[#allocation2 + $0xe0] sm:$0xff]
          %v754 = vld [vmem:[#allocation2 + $0xe8] sm:$0xff]
          %v755 = vld [vmem:[#allocation2 + $0xf0] sm:$0xff]
          %v756 = vld [vmem:[#allocation2 + $0xf8] sm:$0xff]
          %v757 = vld [vmem:[%s249] sm:$0x1]
          %v759 = vlaneseq
          %v760 = vshrl.u32 %v759, 7
          %v761 = vsub.s32 0, %v760
          %v762 = vrot.slane %v757, %v761
          %v764 = vadd.f32 %v725, %v762
          %v765 = vadd.f32 %v726, %v762
          %v766 = vadd.f32 %v727, %v762
          %v767 = vadd.f32 %v728, %v762
          %v768 = vadd.f32 %v729, %v762
          %v769 = vadd.f32 %v730, %v762
          %v770 = vadd.f32 %v731, %v762
          %v771 = vadd.f32 %v732, %v762
          %v772 = vadd.f32 %v733, %v762
          %v773 = vadd.f32 %v734, %v762
          %v774 = vadd.f32 %v735, %v762
          %v775 = vadd.f32 %v736, %v762
          %v776 = vadd.f32 %v737, %v762
          %v777 = vadd.f32 %v738, %v762
          %v778 = vadd.f32 %v739, %v762
          %v779 = vadd.f32 %v740, %v762
          %v780 = vadd.f32 %v741, %v762
          %v781 = vadd.f32 %v742, %v762
          %v782 = vadd.f32 %v743, %v762
          %v783 = vadd.f32 %v744, %v762
          %v784 = vadd.f32 %v745, %v762
          %v785 = vadd.f32 %v746, %v762
          %v786 = vadd.f32 %v747, %v762
          %v787 = vadd.f32 %v748, %v762
          %v788 = vadd.f32 %v749, %v762
          %v789 = vadd.f32 %v750, %v762
          %v790 = vadd.f32 %v751, %v762
          %v791 = vadd.f32 %v752, %v762
          %v792 = vadd.f32 %v753, %v762
          %v793 = vadd.f32 %v754, %v762
          %v794 = vadd.f32 %v755, %v762
          %v795 = vadd.f32 %v756, %v762
          %vm796 = vcmp.gt.f32.partialorder %v764, 0.0
          %vm797 = vcmp.gt.f32.partialorder %v765, 0.0
          %vm798 = vcmp.gt.f32.partialorder %v766, 0.0
          %vm799 = vcmp.gt.f32.partialorder %v767, 0.0
          %vm800 = vcmp.gt.f32.partialorder %v768, 0.0
          %vm801 = vcmp.gt.f32.partialorder %v769, 0.0
          %vm802 = vcmp.gt.f32.partialorder %v770, 0.0
          %vm803 = vcmp.gt.f32.partialorder %v771, 0.0
          %vm804 = vcmp.gt.f32.partialorder %v772, 0.0
          %vm805 = vcmp.gt.f32.partialorder %v773, 0.0
          %vm806 = vcmp.gt.f32.partialorder %v774, 0.0
          %vm807 = vcmp.gt.f32.partialorder %v775, 0.0
          %vm808 = vcmp.gt.f32.partialorder %v776, 0.0
          %vm809 = vcmp.gt.f32.partialorder %v777, 0.0
          %vm810 = vcmp.gt.f32.partialorder %v778, 0.0
          %vm811 = vcmp.gt.f32.partialorder %v779, 0.0
          %vm812 = vcmp.gt.f32.partialorder %v780, 0.0
          %vm813 = vcmp.gt.f32.partialorder %v781, 0.0
          %vm814 = vcmp.gt.f32.partialorder %v782, 0.0
          %vm815 = vcmp.gt.f32.partialorder %v783, 0.0
          %vm816 = vcmp.gt.f32.partialorder %v784, 0.0
          %vm817 = vcmp.gt.f32.partialorder %v785, 0.0
          %vm818 = vcmp.gt.f32.partialorder %v786, 0.0
          %vm819 = vcmp.gt.f32.partialorder %v787, 0.0
          %vm820 = vcmp.gt.f32.partialorder %v788, 0.0
          %vm821 = vcmp.gt.f32.partialorder %v789, 0.0
          %vm822 = vcmp.gt.f32.partialorder %v790, 0.0
          %vm823 = vcmp.gt.f32.partialorder %v791, 0.0
          %vm824 = vcmp.gt.f32.partialorder %v792, 0.0
          %vm825 = vcmp.gt.f32.partialorder %v793, 0.0
          %vm826 = vcmp.gt.f32.partialorder %v794, 0.0
          %vm827 = vcmp.gt.f32.partialorder %v795, 0.0
          %v828 = vmul.f32 %v764, 0.1
          %v829 = vmul.f32 %v765, 0.1
          %v830 = vmul.f32 %v766, 0.1
          %v831 = vmul.f32 %v767, 0.1
          %v832 = vmul.f32 %v768, 0.1
          %v833 = vmul.f32 %v769, 0.1
          %v834 = vmul.f32 %v770, 0.1
          %v835 = vmul.f32 %v771, 0.1
          %v836 = vmul.f32 %v772, 0.1
          %v837 = vmul.f32 %v773, 0.1
          %v838 = vmul.f32 %v774, 0.1
          %v839 = vmul.f32 %v775, 0.1
          %v840 = vmul.f32 %v776, 0.1
          %v841 = vmul.f32 %v777, 0.1
          %v842 = vmul.f32 %v778, 0.1
          %v843 = vmul.f32 %v779, 0.1
          %v844 = vmul.f32 %v780, 0.1
          %v845 = vmul.f32 %v781, 0.1
          %v846 = vmul.f32 %v782, 0.1
          %v847 = vmul.f32 %v783, 0.1
          %v848 = vmul.f32 %v784, 0.1
          %v849 = vmul.f32 %v785, 0.1
          %v850 = vmul.f32 %v786, 0.1
          %v851 = vmul.f32 %v787, 0.1
          %v852 = vmul.f32 %v788, 0.1
          %v853 = vmul.f32 %v789, 0.1
          %v854 = vmul.f32 %v790, 0.1
          %v855 = vmul.f32 %v791, 0.1
          %v856 = vmul.f32 %v792, 0.1
          %v857 = vmul.f32 %v793, 0.1
          %v858 = vmul.f32 %v794, 0.1
          %v859 = vmul.f32 %v795, 0.1
          %v860 = vsel %vm796, %v764, %v828
          %v861 = vsel %vm797, %v765, %v829
          %v862 = vsel %vm798, %v766, %v830
          %v863 = vsel %vm799, %v767, %v831
          %v864 = vsel %vm800, %v768, %v832
          %v865 = vsel %vm801, %v769, %v833
          %v866 = vsel %vm802, %v770, %v834
          %v867 = vsel %vm803, %v771, %v835
          %v868 = vsel %vm804, %v772, %v836
          %v869 = vsel %vm805, %v773, %v837
          %v870 = vsel %vm806, %v774, %v838
          %v871 = vsel %vm807, %v775, %v839
          %v872 = vsel %vm808, %v776, %v840
          %v873 = vsel %vm809, %v777, %v841
          %v874 = vsel %vm810, %v778, %v842
          %v875 = vsel %vm811, %v779, %v843
          %v876 = vsel %vm812, %v780, %v844
          %v877 = vsel %vm813, %v781, %v845
          %v878 = vsel %vm814, %v782, %v846
          %v879 = vsel %vm815, %v783, %v847
          %v880 = vsel %vm816, %v784, %v848
          %v881 = vsel %vm817, %v785, %v849
          %v882 = vsel %vm818, %v786, %v850
          %v883 = vsel %vm819, %v787, %v851
          %v884 = vsel %vm820, %v788, %v852
          %v885 = vsel %vm821, %v789, %v853
          %v886 = vsel %vm822, %v790, %v854
          %v887 = vsel %vm823, %v791, %v855
          %v888 = vsel %vm824, %v792, %v856
          %v889 = vsel %vm825, %v793, %v857
          %v890 = vsel %vm826, %v794, %v858
          %v891 = vsel %vm827, %v795, %v859
          %892 = vst [vmem:[%s228] sm:$0xff] %v860
          %893 = vst [vmem:[%s228 + $0x8] sm:$0xff] %v861
          %894 = vst [vmem:[%s228 + $0x10] sm:$0xff] %v862
          %895 = vst [vmem:[%s228 + $0x18] sm:$0xff] %v863
          %896 = vst [vmem:[%s228 + $0x20] sm:$0xff] %v864
          %897 = vst [vmem:[%s228 + $0x28] sm:$0xff] %v865
          %898 = vst [vmem:[%s228 + $0x30] sm:$0xff] %v866
          %899 = vst [vmem:[%s228 + $0x38] sm:$0xff] %v867
          %900 = vst [vmem:[%s228 + $0x40] sm:$0xff] %v868
          %901 = vst [vmem:[%s228 + $0x48] sm:$0xff] %v869
          %902 = vst [vmem:[%s228 + $0x50] sm:$0xff] %v870
          %903 = vst [vmem:[%s228 + $0x58] sm:$0xff] %v871
          %904 = vst [vmem:[%s228 + $0x60] sm:$0xff] %v872
          %905 = vst [vmem:[%s228 + $0x68] sm:$0xff] %v873
          %906 = vst [vmem:[%s228 + $0x70] sm:$0xff] %v874
          %907 = vst [vmem:[%s228 + $0x78] sm:$0xff] %v875
          %908 = vst [vmem:[%s228 + $0x80] sm:$0xff] %v876
          %909 = vst [vmem:[%s228 + $0x88] sm:$0xff] %v877
          %910 = vst [vmem:[%s228 + $0x90] sm:$0xff] %v878
          %911 = vst [vmem:[%s228 + $0x98] sm:$0xff] %v879
          %912 = vst [vmem:[%s228 + $0xa0] sm:$0xff] %v880
          %913 = vst [vmem:[%s228 + $0xa8] sm:$0xff] %v881
          %914 = vst [vmem:[%s228 + $0xb0] sm:$0xff] %v882
          %915 = vst [vmem:[%s228 + $0xb8] sm:$0xff] %v883
          %916 = vst [vmem:[%s228 + $0xc0] sm:$0xff] %v884
          %917 = vst [vmem:[%s228 + $0xc8] sm:$0xff] %v885
          %918 = vst [vmem:[%s228 + $0xd0] sm:$0xff] %v886
          %919 = vst [vmem:[%s228 + $0xd8] sm:$0xff] %v887
          %920 = vst [vmem:[%s228 + $0xe0] sm:$0xff] %v888
          %921 = vst [vmem:[%s228 + $0xe8] sm:$0xff] %v889
          %922 = vst [vmem:[%s228 + $0xf0] sm:$0xff] %v890
          %923 = vst [vmem:[%s228 + $0xf8] sm:$0xff] %v891
        $region40: #{tpu_custom_call.1} parent=31 // pred_fallthru
          _
        %s924 = sand.u32 %s128, 1
        %s925 = scalar_lea.sflag [#allocation4], %s924
        %s926 = sand.u32 %s128, 1
        %s927 = smul.addr %s926, 256
        %s928 = scalar_lea.vmem [#allocation3], %s927
        // Predicated region
        $region41: #{tpu_custom_call.1} parent=31 // pred_check
          %p929 = pneg %p138
        $region42: #{tpu_custom_call.1} parent=31 // pred_check_branch
          %931 = sbr.rel (%p929) target = $region44
        $region43: #{tpu_custom_call.1} parent=31 // pred_region
          %s932 = smul.u32 32, %s22
          %s934 = ssub.s32 4096, 4096
          %935 = vsyncadd %s925, %s934
          %s936 = sadd.s32 %s23, %s932
          %s937 = smul.addr %s936, 128
          %s938 = scalar_lea.hbm %s3, %s937
          %s939 = sshll.u32 %s928, 4
          %s940 = int_to_ptr.vmem [resolvable:$true] %s939
          %945 = dma.vmem_to_hbm [thread:$0]  %s940, 4096, %s938, %s925, 128, 128, 8
        $region44: #{tpu_custom_call.1} parent=31 // pred_fallthru
          _
      $region32: #{tpu_custom_call.1} parent=5 // pred_fallthru
        _
      %p946 = scmp.le.s32.totalorder 2, %s12
      // Predicated region
      $region45: #{tpu_custom_call.1} parent=5 // pred_check
        %p947 = pneg %p946
      $region46: #{tpu_custom_call.1} parent=5 // pred_check_branch
        %949 = sbr.rel (%p947) target = $region48
      $region47: #{tpu_custom_call.1} parent=5 // pred_region
        %s950 = ssub.s32 %s12, 2
        // Predicated region
        $region49: #{tpu_custom_call.1} parent=47 // pred_check
          %p951 = pneg %p144
        $region50: #{tpu_custom_call.1} parent=47 // pred_check_branch
          %953 = sbr.rel (%p951) target = $region52
        $region51: #{tpu_custom_call.1} parent=47 // pred_region
          %s954 = sand.u32 %s129, 1
          %s955 = scalar_lea.sflag [#allocation4], %s954
          %s956 = sand.u32 %s129, 1
          %s957 = smul.addr %s956, 256
          %s958 = scalar_lea.vmem [#allocation3], %s957
          %959 = dma.done %s955, 4096
        $region52: #{tpu_custom_call.1} parent=47 // pred_fallthru
          _
      $region48: #{tpu_custom_call.1} parent=5 // pred_fallthru
        _
    $region6: #{tpu_custom_call.1} parent=1 // loop_footer
      %s16 = sadd.s32 1, %s12
    $region7: #{tpu_custom_call.1} parent=1 // loop_footer_branch
      %11 = sbr.rel target = $region3
    $region8: #{tpu_custom_call.1} parent=1 // loop_exit
      _
    %960 = vsyncpa [#allocation4], 1
    %s961 = scalar_lea.sflag [#allocation4], 1
    %962 = vsyncpa %s961, 1

</llo_original>
